<compile_context>
chip_gen: v7x
topology: tpu7x:2x2x1
jax: 0.10.0
libtpu: 0.0.40
codegen_flags: <defaults>
</compile_context>

<pallas_src>
import numpy as np

import jax
import jax.numpy as jnp
from jax.experimental import pallas as pl
from jax.experimental.pallas import tpu as pltpu


# ----------------------------------------------------------------------------
# STFT configuration (torchaudio defaults, scaled down to small synthetic size)
#   win_length = n_fft, hop_length = n_fft // 2, center=True,
#   pad_mode='reflect', onesided=True, normalized=False, window=hann(periodic)
# ----------------------------------------------------------------------------
N_FFT = 16
HOP = N_FFT // 2
K_BINS = N_FFT // 2 + 1          # onesided frequency bins
PACK = 128 // N_FFT              # frames packed per 128-lane vreg row (=8)


def _hann_window(n_fft):
    # torch.hann_window default (periodic=True): 0.5 - 0.5*cos(2*pi*m/N)
    m = np.arange(n_fft, dtype=np.float64)
    return 0.5 - 0.5 * np.cos(2.0 * np.pi * m / n_fft)


def _fused_operator(n_fft, hop):
    """Trace-time numpy constant: per-frame STFT -> identity -> iSTFT operator.

    Analysis window, synthesis window and the inverse OLA envelope are all
    folded in, then the per-frame (W, W) operator is packed block-diagonally
    for PACK frames per 128-lane row -> (128, 128).
    """
    assert n_fft % 2 == 0, "irfft weights below assume even n_fft"
    assert 2 * hop == n_fft, "envelope fold assumes hop = n_fft // 2"
    W, K, H = n_fft, n_fft // 2 + 1, hop

    win = _hann_window(n_fft)                                    # float64
    m = np.arange(W, dtype=np.float64)[:, None]                  # (W, 1)
    k = np.arange(K, dtype=np.float64)[None, :]                  # (1, K)
    ang = 2.0 * np.pi * m * k / n_fft                            # (W, K)

    # forward (windowed rfft): frame(W) -> packed [Re | Im] (2K)
    C = win[:, None] * np.concatenate([np.cos(ang), -np.sin(ang)], axis=1)   # (W, 2K)

    # inverse (irfft weights for even n_fft) with synthesis window:
    #   x[m] = sum_k (w_k/N) * (Xre cos - Xim sin),  w_k = 1 for DC/Nyquist else 2
    wgt = np.ones((K,), np.float64)
    wgt[1:K - 1] = 2.0
    dre = (wgt[:, None] / n_fft) * np.cos(ang.T)                 # (K, W)
    dsin = (wgt[:, None] / n_fft) * np.sin(ang.T)                # (K, W)
    D = np.concatenate([dre, -dsin], axis=0) * win[None, :]      # (2K, W)

    # Fold the OLA normalization 1/env into the synthesis basis.  Over the
    # *kept* region (center pad == hop and hop == n_fft/2) the window-square
    # envelope is exactly H-periodic: env8[m] = win[m]^2 + win[m+H]^2; the
    # non-periodic edge ramps live entirely in the trimmed pad samples.
    env8 = win[:H] ** 2 + win[H:] ** 2                           # (H,)
    assert env8.min() > 1e-6, "OLA envelope must be bounded away from zero"
    D = D / np.tile(env8, W // H)[None, :]

    # TODO(synk): separate() is abstract in tf_bss_model_base; with the identity
    # pass-through the two bases fuse into a single per-frame operator E = C @ D.
    # When separate() becomes non-trivial, ship kron(I, C) and kron(I, D)
    # separately (padding 2K -> 32 lanes per frame for clean MXU shapes) and
    # apply separate() on the spectrum between the two matmuls in the kernel.
    E = C @ D                                                    # (W, W)
    Eblk = np.kron(np.eye(PACK), E).astype(np.float32)           # (128, 128)
    return Eblk


# ----------------------------------------------------------------------------
# Pallas kernel: packed frames -> fused STFT/identity-separate/iSTFT synthesis
# (windows + OLA envelope pre-folded; one 128x128 MXU matmul per row tile)
# ----------------------------------------------------------------------------
def bss_kernel(frames_ref, e_ref, out_ref):
    out_ref[...] = jnp.dot(frames_ref[...], e_ref[...],
                           preferred_element_type=jnp.float32).astype(out_ref.dtype)


def tf_bss_forward(xnt, *, tile_rows=1024):
    """xnt: (n, T) float32 -> (n, T) float32 (STFT -> identity separate -> iSTFT)."""
    n, T = xnt.shape
    W, H = N_FFT, HOP
    pad = W // 2
    assert W == 2 * H, "structured overlap-add assumes hop = n_fft // 2"
    assert pad == H, "envelope fold into the basis requires center pad == hop"
    assert T % H == 0, "demo assumes signal length divisible by hop"
    # TODO(synk): the lane-packing scheme assumes n_fft divides 128; realistic
    # n_fft (256/512/1024) needs a per-frame (not block-diagonal) tiling.
    assert 128 % W == 0 and PACK * W == 128

    Eblk = jnp.asarray(_fused_operator(W, H))                    # (128, 128) f32

    # --- glue: center reflect-pad (torchaudio center=True, pad_mode='reflect')
    xpad = jnp.pad(xnt, ((0, 0), (pad, pad)), mode="reflect")    # (n, T + W)
    padded_len = T + 2 * pad
    L = 1 + (padded_len - W) // H
    assert (L + 1) * H == padded_len

    # --- frame without gather: frame l = blocks[l] ++ blocks[l+1]
    # TODO(synk): framing (and the OLA below) still materialize ~2x the audio in
    # XLA; next step is in-kernel framing/overlap-add via halo rows, which needs
    # a different packing once n_fft no longer divides 128.
    blocks = xpad.reshape(n, L + 1, H)
    frames = jnp.concatenate([blocks[:, :L], blocks[:, 1:]], axis=-1)  # (n, L, W)

    # --- pack PACK frames per 128-lane row; pad row count to a tile multiple
    nf = n * L
    rows = -(-nf // PACK)                                        # packed rows needed
    tile_p = min(tile_rows, -(-rows // 8) * 8)                   # multiple of 8
    P = -(-rows // tile_p) * tile_p                              # padded, tiles evenly
    frames_flat = frames.reshape(nf, W)
    if P * PACK != nf:
        frames_flat = jnp.pad(frames_flat, ((0, P * PACK - nf), (0, 0)))
    frames_packed = frames_flat.reshape(P, PACK * W)             # (P, 128)

    out_packed = pl.pallas_call(
        bss_kernel,
        out_shape=jax.ShapeDtypeStruct((P, PACK * W), jnp.float32),
        grid=(P // tile_p,),
        in_specs=[
            pl.BlockSpec((tile_p, PACK * W), lambda i: (i, 0)),      # row tiles
            pl.BlockSpec((PACK * W, PACK * W), lambda i: (0, 0)),    # basis, resident
        ],
        out_specs=pl.BlockSpec((tile_p, PACK * W), lambda i: (i, 0)),
        compiler_params=pltpu.CompilerParams(
            dimension_semantics=("parallel",)),
    )(frames_packed, Eblk)

    out_frames = out_packed.reshape(P * PACK, W)[:nf].reshape(n, L, W)

    # --- structured overlap-add (hop = W/2): concat + add, no scatter.
    # Envelope normalization is already folded into the synthesis basis.
    fh = out_frames[:, :, :H]                                    # (n, L, H)
    sh = out_frames[:, :, H:]                                    # (n, L, H)
    zrow = jnp.zeros((n, 1, H), jnp.float32)
    y = (jnp.concatenate([fh, zrow], axis=1)
         + jnp.concatenate([zrow, sh], axis=1)).reshape(n, padded_len)

    # --- trim center padding to original length (torch.istft length=T)
    return y[:, pad:pad + T]


if __name__ == "__main__":
    key = jax.random.PRNGKey(0)
    n_channels, T = 2, 128
    xnt = jax.random.normal(key, (n_channels, T), dtype=jnp.float32)

    ynt = tf_bss_forward(xnt)
    ynt = jax.block_until_ready(ynt)

    # Sanity: identity separation => STFT/iSTFT round trip reconstructs input.
    assert ynt.shape == xnt.shape
    err = float(jnp.max(jnp.abs(ynt - xnt)))
    assert err < 1e-3, f"round-trip error too large: {err}"
    print("KERNEL_OK")
</pallas_src>

<mosaic_0001>
module attributes {stable_mosaic.version = 11 : i64} {
  func.func @bss_kernel(%arg0: i32, %arg1: memref<8x128xf32, #tpu.memory_space<vmem>>, %arg2: memref<128x128xf32, #tpu.memory_space<vmem>>, %arg3: memref<8x128xf32, #tpu.memory_space<vmem>>) attributes {dimension_semantics = [#tpu.dimension_semantics<parallel>], iteration_bounds = array<i64: 1>, scalar_prefetch = 0 : i64, scratch_operands = 0 : i64, tpu.core_type = #tpu.core_type<tc>, window_params = [{transform_indices = @transform_0, window_bounds = array<i64: 8, 128>}, {pipeline_mode = #tpu.pipeline_mode<synchronous>, transform_indices = @transform_1, window_bounds = array<i64: 128, 128>}, {transform_indices = @transform_2, window_bounds = array<i64: 8, 128>}]} {
    %c0 = arith.constant 0 : index
    %c0_0 = arith.constant 0 : index
    %0 = vector.load %arg1[%c0, %c0_0] : memref<8x128xf32, #tpu.memory_space<vmem>>, vector<8x128xf32>
    %c0_1 = arith.constant 0 : index
    %c0_2 = arith.constant 0 : index
    %1 = vector.load %arg2[%c0_1, %c0_2] : memref<128x128xf32, #tpu.memory_space<vmem>>, vector<128x128xf32>
    %cst = arith.constant dense<0.000000e+00> : vector<8x128xf32>
    %2 = tpu.matmul %0, %1, %cst {dimension_numbers = #tpu.dot_dimension_numbers<[1], [0], [0], [1], [0, 0, 1, 1], [], []>} : vector<8x128xf32>, vector<128x128xf32>, vector<8x128xf32> -> vector<8x128xf32>
    %c0_3 = arith.constant 0 : index
    %c0_4 = arith.constant 0 : index
    %3 = vector.load %arg3[%c0_3, %c0_4] : memref<8x128xf32, #tpu.memory_space<vmem>>, vector<8x128xf32>
    tpu.vector_store %arg3[%c0_3, %c0_4], %2 {strides = array<i32>} : memref<8x128xf32, #tpu.memory_space<vmem>>, vector<8x128xf32>,
    return
  }
  func.func @transform_0(%arg0: i32) -> (i32, i32) {
    %c0_i32 = arith.constant 0 : i32
    %c0_i32_0 = arith.constant 0 : i32
    return %arg0, %c0_i32 : i32, i32
  }
  func.func @transform_1(%arg0: i32) -> (i32, i32) {
    %c0_i32 = arith.constant 0 : i32
    %c0_i32_0 = arith.constant 0 : i32
    %c0_i32_1 = arith.constant 0 : i32
    return %c0_i32, %c0_i32_0 : i32, i32
  }
  func.func @transform_2(%arg0: i32) -> (i32, i32) {
    %c0_i32 = arith.constant 0 : i32
    %c0_i32_0 = arith.constant 0 : i32
    return %arg0, %c0_i32 : i32, i32
  }
}

</mosaic_0001>

<llo_original>
// kernel: tpu_custom_call.1
$region0: #{tpu_custom_call.1}
  #allocation0 [shape = 'u32[]', space=smem, size = 0x4, offset = 0x4, fixed_abs, tag = 'smem constant byte address 0x4 - core index']
  #allocation1 [shape = 'u32[144,128]{1,0:T(1,128)}', space=vmem, size = 0x12000, scoped, tag = 'internal scratch']
  %s0 = inlined_call_operand.hbm [shape: f32[8,128], index: 0, kind: input, shape index: {}]
  %s1 = inlined_call_operand.hbm [shape: f32[128,128], index: 1, kind: input, shape index: {}]
  %s2 = inlined_call_operand.hbm [shape: f32[8,128], index: 2, kind: output, shape index: {}]
  %s3 = sld [smem:[#allocation0]]
  $region26: #{tpu_custom_call.1} parent=0
    _
  %s5 = ssub.s32 1, %s3
  %s6 = scalar_select 0, %s5, %s3
  $region1: #{tpu_custom_call.1} parent=0
    #allocation2 [shape = 'u8[4096]{0}', space=vmem, size = 0x1000, scoped, tag = 'input window, operand 0, single buffered']
    #allocation3 [shape = 's32[1]{0}', space=sflag, size = 0x4, scoped, tag = 'scoped memory for tpu_custom_call.1']
    #allocation4 [shape = 's32[1]{0}', space=sflag, size = 0x4, scoped, tag = 'scoped memory for tpu_custom_call.1']
    #allocation5 [shape = 'u8[65536]{0}', space=vmem, size = 0x10000, scoped, tag = 'input window, operand 1, single buffered']
    #allocation6 [shape = 's32[1]{0}', space=sflag, size = 0x4, scoped, tag = 'scoped memory for tpu_custom_call.1']
    #allocation7 [shape = 'u8[4096]{0}', space=vmem, size = 0x1000, scoped, tag = 'output window, operand 0, single buffered']
    %7 = vsyncpa [#allocation3], 0
    %8 = vsyncpa [#allocation6], 0
    %9 = vsyncpa [#allocation4], 0
    // Predicated region
    $region2: #{tpu_custom_call.1} parent=1 // pred_check
      _
    $region3: #{tpu_custom_call.1} parent=1 // pred_check_branch
      %11 = sbr.rel (0) target = $region5
    $region4: #{tpu_custom_call.1} parent=1 // pred_region
      %s13 = ssub.s32 128, 128
      %14 = vsyncadd [#allocation3], %s13
      %s16 = sshll.u32 [#allocation2], 4
      %s17 = int_to_ptr.vmem [resolvable:$true] %s16
      %19 = dma.hbm_to_vmem [thread:$0]  %s0, 128, %s17, [#allocation3]
    $region5: #{tpu_custom_call.1} parent=1 // pred_fallthru
      _
    // Predicated region
    $region6: #{tpu_custom_call.1} parent=1 // pred_check
      _
    $region7: #{tpu_custom_call.1} parent=1 // pred_check_branch
      %21 = sbr.rel (0) target = $region9
    $region8: #{tpu_custom_call.1} parent=1 // pred_region
      %s23 = ssub.s32 2048, 2048
      %24 = vsyncadd [#allocation6], %s23
      %s25 = sshll.u32 [#allocation5], 4
      %s26 = int_to_ptr.vmem [resolvable:$true] %s25
      %31 = dma.hbm_to_vmem [thread:$0]  %s1, 2048, %s26, [#allocation6], 128, 128, 8
    $region9: #{tpu_custom_call.1} parent=1 // pred_fallthru
      _
    // Predicated region
    $region10: #{tpu_custom_call.1} parent=1 // pred_check
      _
    $region11: #{tpu_custom_call.1} parent=1 // pred_check_branch
      %33 = sbr.rel (0) target = $region13
    $region12: #{tpu_custom_call.1} parent=1 // pred_region
      %34 = dma.done [#allocation3], 128
    $region13: #{tpu_custom_call.1} parent=1 // pred_fallthru
      _
    // Predicated region
    $region14: #{tpu_custom_call.1} parent=1 // pred_check
      _
    $region15: #{tpu_custom_call.1} parent=1 // pred_check_branch
      %36 = sbr.rel (0) target = $region17
    $region16: #{tpu_custom_call.1} parent=1 // pred_region
      %37 = dma.done [#allocation6], 2048
    $region17: #{tpu_custom_call.1} parent=1 // pred_fallthru
      _
    %v38 = vld [vmem:[#allocation2] sm:$0xff]
    %v39 = vld [vmem:[#allocation5] sm:$0xff]
    %v40 = vld [vmem:[#allocation5 + $0x8] sm:$0xff]
    %v41 = vld [vmem:[#allocation5 + $0x10] sm:$0xff]
    %v42 = vld [vmem:[#allocation5 + $0x18] sm:$0xff]
    %v43 = vld [vmem:[#allocation5 + $0x20] sm:$0xff]
    %v44 = vld [vmem:[#allocation5 + $0x28] sm:$0xff]
    %v45 = vld [vmem:[#allocation5 + $0x30] sm:$0xff]
    %v46 = vld [vmem:[#allocation5 + $0x38] sm:$0xff]
    %v47 = vld [vmem:[#allocation5 + $0x40] sm:$0xff]
    %v48 = vld [vmem:[#allocation5 + $0x48] sm:$0xff]
    %v49 = vld [vmem:[#allocation5 + $0x50] sm:$0xff]
    %v50 = vld [vmem:[#allocation5 + $0x58] sm:$0xff]
    %v51 = vld [vmem:[#allocation5 + $0x60] sm:$0xff]
    %v52 = vld [vmem:[#allocation5 + $0x68] sm:$0xff]
    %v53 = vld [vmem:[#allocation5 + $0x70] sm:$0xff]
    %v54 = vld [vmem:[#allocation5 + $0x78] sm:$0xff]
    %55 = vmatprep.subr.mxu0 0.0
    %56 = vmatpush1.msra.mxu0 %v39
    %57 = vmatprep.subr.mxu0 0.0
    %58 = vmatpush1.msra.mxu0 %v40
    %59 = vmatprep.subr.mxu0 0.0
    %60 = vmatpush1.msra.mxu0 %v41
    %61 = vmatprep.subr.mxu0 0.0
    %62 = vmatpush1.msra.mxu0 %v42
    %63 = vmatprep.subr.mxu0 0.0
    %64 = vmatpush1.msra.mxu0 %v43
    %65 = vmatprep.subr.mxu0 0.0
    %66 = vmatpush1.msra.mxu0 %v44
    %67 = vmatprep.subr.mxu0 0.0
    %68 = vmatpush1.msra.mxu0 %v45
    %69 = vmatprep.subr.mxu0 0.0
    %70 = vmatpush1.msra.mxu0 %v46
    %71 = vmatprep.subr.mxu0 0.0
    %72 = vmatpush1.msra.mxu0 %v47
    %73 = vmatprep.subr.mxu0 0.0
    %74 = vmatpush1.msra.mxu0 %v48
    %75 = vmatprep.subr.mxu0 0.0
    %76 = vmatpush1.msra.mxu0 %v49
    %77 = vmatprep.subr.mxu0 0.0
    %78 = vmatpush1.msra.mxu0 %v50
    %79 = vmatprep.subr.mxu0 0.0
    %80 = vmatpush1.msra.mxu0 %v51
    %81 = vmatprep.subr.mxu0 0.0
    %82 = vmatpush1.msra.mxu0 %v52
    %83 = vmatprep.subr.mxu0 0.0
    %84 = vmatpush1.msra.mxu0 %v53
    %85 = vmatprep.subr.mxu0 0.0
    %86 = vmatpush1.msra.mxu0 %v54
    %87 = vmatprep.subr.mxu0 0.0
    %88 = vmatpush1.msra.mxu0 0.0
    %89 = vmatprep.subr.mxu0 0.0
    %90 = vmatpush1.msra.mxu0 0.0
    %91 = vmatprep.subr.mxu0 0.0
    %92 = vmatpush1.msra.mxu0 0.0
    %93 = vmatprep.subr.mxu0 0.0
    %94 = vmatpush1.msra.mxu0 0.0
    %95 = vmatprep.subr.mxu0 0.0
    %96 = vmatpush1.msra.mxu0 0.0
    %97 = vmatprep.subr.mxu0 0.0
    %98 = vmatpush1.msra.mxu0 0.0
    %99 = vmatprep.subr.mxu0 0.0
    %100 = vmatpush1.msra.mxu0 0.0
    %101 = vmatprep.subr.mxu0 0.0
    %102 = vmatpush1.msra.mxu0 0.0
    %103 = vmatprep.subr.mxu0 0.0
    %104 = vmatpush1.msra.mxu0 0.0
    %105 = vmatprep.subr.mxu0 0.0
    %106 = vmatpush1.msra.mxu0 0.0
    %107 = vmatprep.subr.mxu0 0.0
    %108 = vmatpush1.msra.mxu0 0.0
    %109 = vmatprep.subr.mxu0 0.0
    %110 = vmatpush1.msra.mxu0 0.0
    %111 = vmatprep.subr.mxu0 0.0
    %112 = vmatpush1.msra.mxu0 0.0
    %113 = vmatprep.subr.mxu0 0.0
    %114 = vmatpush1.msra.mxu0 0.0
    %115 = vmatprep.subr.mxu0 0.0
    %116 = vmatpush1.msra.mxu0 0.0
    %117 = vmatprep.subr.mxu0 0.0
    %118 = vmatpush1.msra.mxu0 0.0
    %119 = vmatprep.mubr.f32.mxu0 0.0
    %120 = vmatmul.mubr.f32.gmra.mrb[0].mxu0 %v38
    %v121 = vpop.f32.mrb[0].mxu0
    %v122 = vadd.f32 0.0, %v121
    %v123 = vpop.f32.mrb[0].mxu0
    %124 = vdwg.mxu0
    %125 = vst [vmem:[#allocation7] sm:$0xff] %v122
    // Predicated region
    $region18: #{tpu_custom_call.1} parent=1 // pred_check
      _
    $region19: #{tpu_custom_call.1} parent=1 // pred_check_branch
      %127 = sbr.rel (0) target = $region21
    $region20: #{tpu_custom_call.1} parent=1 // pred_region
      %s129 = ssub.s32 128, 128
      %130 = vsyncadd [#allocation4], %s129
      %s132 = sshll.u32 [#allocation7], 4
      %s133 = int_to_ptr.vmem [resolvable:$true] %s132
      %135 = dma.vmem_to_hbm [thread:$0]  %s133, 128, %s2, [#allocation4]
    $region21: #{tpu_custom_call.1} parent=1 // pred_fallthru
      _
    // Predicated region
    $region22: #{tpu_custom_call.1} parent=1 // pred_check
      _
    $region23: #{tpu_custom_call.1} parent=1 // pred_check_branch
      %137 = sbr.rel (0) target = $region25
    $region24: #{tpu_custom_call.1} parent=1 // pred_region
      %138 = dma.done [#allocation4], 128
    $region25: #{tpu_custom_call.1} parent=1 // pred_fallthru
      _
    %139 = vsyncpa [#allocation3], 1
    %140 = vsyncpa [#allocation6], 1
    %141 = vsyncpa [#allocation4], 1

</llo_original>
